<compile_context>
chip_gen: v7x
topology: tpu7x:2x2x1
jax: 0.10.0
libtpu: 0.0.40
codegen_flags: <defaults>
</compile_context>

<pallas_src>
import math

import jax
import jax.numpy as jnp
from jax.experimental import pallas as pl
from jax.experimental.pallas import tpu as pltpu


# ----------------------------------------------------------------------------
# Pallas kernel: one output-column block per grid step, K fully resident.
#   x: (M, K) f32 (resident), w: (K, tn) f32, b: (1, tn) f32, o: (M, tn) f32
# ----------------------------------------------------------------------------
def _affine_kernel(x_ref, w_ref, b_ref, o_ref):
    acc = jnp.dot(x_ref[...], w_ref[...], preferred_element_type=jnp.float32)
    o_ref[...] = (acc + b_ref[...]).astype(o_ref.dtype)


def _pick_tn(n, k, max_bytes=12 * 1024 * 1024):
    """Largest tn (multiple of 128, dividing n) giving >= 2 blocks and fitting
    a double-buffered (k, tn) f32 weight panel in `max_bytes`. Falls back to n."""
    best = None
    cand = 128
    while cand <= n:
        if n % cand == 0 and n // cand >= 2 and 2 * cand * k * 4 <= max_bytes:
            best = cand
        cand += 128
    return best if best is not None else n


def pallas_affine(x, w, b):
    """y = x @ w + b   (x: (M, K) f32, w: (K, N) f32, b: (N,) f32)."""
    M, K = x.shape
    Kw, N = w.shape
    assert K == Kw, (K, Kw)
    assert M % 8 == 0 and K % 128 == 0 and N % 128 == 0, (M, K, N)

    tn = _pick_tn(N, K)
    b2 = b.reshape(1, N)

    return pl.pallas_call(
        _affine_kernel,
        out_shape=jax.ShapeDtypeStruct((M, N), jnp.float32),
        grid_spec=pltpu.PrefetchScalarGridSpec(
            num_scalar_prefetch=0,
            grid=(N // tn,),
            in_specs=[
                pl.BlockSpec((M, K), lambda j: (0, 0)),    # activation (resident)
                pl.BlockSpec((K, tn), lambda j: (0, j)),   # weight column panel
                pl.BlockSpec((1, tn), lambda j: (0, j)),   # bias slice (tiny DMA)
            ],
            out_specs=pl.BlockSpec((M, tn), lambda j: (0, j)),
        ),
        compiler_params=pltpu.CompilerParams(
            dimension_semantics=("parallel",),
        ),
    )(x, w, b2)


# ----------------------------------------------------------------------------
# Parameter construction (deterministic, PyTorch-Linear-style uniform init).
# ----------------------------------------------------------------------------
_RAW_DIMS = [
    (768, 3072),   # fc1
    (3072, 1024),  # fc2
    (1024, 768),   # fc3
    (768, 300),    # fc4
    (300, 768),    # fc5
]

_HIGH = jax.lax.Precision.HIGHEST


def _init_linear(key, fan_in, fan_out):
    kw, kb = jax.random.split(key)
    bound = 1.0 / math.sqrt(fan_in)
    w = jax.random.uniform(kw, (fan_in, fan_out), jnp.float32, -bound, bound)
    b = jax.random.uniform(kb, (fan_out,), jnp.float32, -bound, bound)
    return w, b


def make_submodule_params(key):
    keys = jax.random.split(key, len(_RAW_DIMS))
    return [_init_linear(k, fin, fout) for k, (fin, fout) in zip(keys, _RAW_DIMS)]


def fold_affine_chain(layer_list):
    """Fold a list of (W, b) affine layers into one (W_total, b_total), f32 HIGHEST."""
    w_tot, b_tot = layer_list[0]
    for w, b in layer_list[1:]:
        w_tot = jnp.dot(w_tot, w, precision=_HIGH)
        b_tot = jnp.dot(b_tot, w, precision=_HIGH) + b
    return w_tot, b_tot


def fold_module(params1, params2):
    """Whole TestModule forward (layer1 then layer2) as a single 768x768 affine.

    dropout(p=0.0) is the identity and self.param is unused in forward, so the
    full chain is affine and the fold is exact in real arithmetic.
    """
    return fold_affine_chain(params1 + params2)


# ----------------------------------------------------------------------------
# Forward pass: one Pallas launch for the entire module.
# ----------------------------------------------------------------------------
@jax.jit
def test_module_forward(w_total, b_total, x):
    B, S, D = x.shape
    h = x.reshape(B * S, D)
    h = pallas_affine(h, w_total, b_total)
    return h.reshape(B, S, D)


# Pure-JAX per-layer reference (unfolded), for a numeric sanity check.
def _reference_forward(params1, params2, x):
    B, S, D = x.shape
    h = x.reshape(B * S, D)
    for w, b in params1 + params2:
        h = jnp.dot(h, w, precision=_HIGH) + b
    return h.reshape(B, S, D)


if __name__ == "__main__":
    key = jax.random.PRNGKey(0)
    k_p1, k_p2, k_x = jax.random.split(key, 3)

    params1 = make_submodule_params(k_p1)   # layer1
    params2 = make_submodule_params(k_p2)   # layer2 (CheckpointBlock: same fwd math)

    # One-time fold (setup cost, outside the forward jit).
    w_total, b_total = fold_module(params1, params2)
    w_total, b_total = jax.block_until_ready((w_total, b_total))

    batch, seq, hidden = 2, 8, 768
    x = jax.random.normal(k_x, (batch, seq, hidden), jnp.float32)

    out = test_module_forward(w_total, b_total, x)
    jax.block_until_ready(out)

    assert out.shape == (batch, seq, hidden), out.shape
    assert bool(jnp.all(jnp.isfinite(out)))

    # Sanity check vs the unfolded per-layer reference (generous tolerance to
    # cover MXU f32-pass rounding in the single Pallas matmul).
    ref = _reference_forward(params1, params2, x)
    max_err = float(jnp.max(jnp.abs(out - ref)))
    assert max_err < 5e-2, f"max abs error vs per-layer reference: {max_err}"

    print("KERNEL_OK")
</pallas_src>

<mosaic_0001>
module attributes {stable_mosaic.version = 11 : i64} {
  func.func @_affine_kernel(%arg0: i32, %arg1: memref<16x768xf32, #tpu.memory_space<vmem>>, %arg2: memref<768x384xf32, #tpu.memory_space<vmem>>, %arg3: memref<1x384xf32, #tpu.memory_space<vmem>>, %arg4: memref<16x384xf32, #tpu.memory_space<vmem>>) attributes {dimension_semantics = [#tpu.dimension_semantics<parallel>], iteration_bounds = array<i64: 2>, scalar_prefetch = 0 : i64, scratch_operands = 0 : i64, tpu.core_type = #tpu.core_type<tc>, window_params = [{pipeline_mode = #tpu.pipeline_mode<synchronous>, transform_indices = @transform_0, window_bounds = array<i64: 16, 768>}, {transform_indices = @transform_1, window_bounds = array<i64: 768, 384>}, {transform_indices = @transform_2, window_bounds = array<i64: 1, 384>}, {transform_indices = @transform_3, window_bounds = array<i64: 16, 384>}]} {
    %c0 = arith.constant 0 : index
    %c0_0 = arith.constant 0 : index
    %0 = vector.load %arg1[%c0, %c0_0] : memref<16x768xf32, #tpu.memory_space<vmem>>, vector<16x768xf32>
    %c0_1 = arith.constant 0 : index
    %c0_2 = arith.constant 0 : index
    %1 = vector.load %arg2[%c0_1, %c0_2] : memref<768x384xf32, #tpu.memory_space<vmem>>, vector<768x384xf32>
    %cst = arith.constant dense<0.000000e+00> : vector<16x384xf32>
    %2 = tpu.matmul %0, %1, %cst {dimension_numbers = #tpu.dot_dimension_numbers<[1], [0], [0], [1], [0, 0, 1, 1], [], []>} : vector<16x768xf32>, vector<768x384xf32>, vector<16x384xf32> -> vector<16x384xf32>
    %c0_3 = arith.constant 0 : index
    %c0_4 = arith.constant 0 : index
    %3 = vector.load %arg3[%c0_3, %c0_4] : memref<1x384xf32, #tpu.memory_space<vmem>>, vector<1x384xf32>
    %4 = vector.broadcast %3 : vector<1x384xf32> to vector<16x384xf32>
    %5 = arith.addf %2, %4 : vector<16x384xf32>
    %c0_5 = arith.constant 0 : index
    %c0_6 = arith.constant 0 : index
    %6 = vector.load %arg4[%c0_5, %c0_6] : memref<16x384xf32, #tpu.memory_space<vmem>>, vector<16x384xf32>
    tpu.vector_store %arg4[%c0_5, %c0_6], %5 {strides = array<i32>} : memref<16x384xf32, #tpu.memory_space<vmem>>, vector<16x384xf32>,
    return
  }
  func.func @transform_0(%arg0: i32) -> (i32, i32) {
    %c0_i32 = arith.constant 0 : i32
    %c0_i32_0 = arith.constant 0 : i32
    %c0_i32_1 = arith.constant 0 : i32
    return %c0_i32, %c0_i32_0 : i32, i32
  }
  func.func @transform_1(%arg0: i32) -> (i32, i32) {
    %c0_i32 = arith.constant 0 : i32
    %c0_i32_0 = arith.constant 0 : i32
    return %c0_i32, %arg0 : i32, i32
  }
  func.func @transform_2(%arg0: i32) -> (i32, i32) {
    %c0_i32 = arith.constant 0 : i32
    %c0_i32_0 = arith.constant 0 : i32
    return %c0_i32, %arg0 : i32, i32
  }
  func.func @transform_3(%arg0: i32) -> (i32, i32) {
    %c0_i32 = arith.constant 0 : i32
    %c0_i32_0 = arith.constant 0 : i32
    return %c0_i32, %arg0 : i32, i32
  }
}

</mosaic_0001>

<llo_original>
// kernel: test_module_forward.1
$region0: #{test_module_forward.1}
  #allocation0 [shape = 'u32[]', space=smem, size = 0x4, offset = 0x4, fixed_abs, tag = 'smem constant byte address 0x4 - core index']
  #allocation1 [shape = 'u32[144,128]{1,0:T(1,128)}', space=vmem, size = 0x12000, scoped, tag = 'internal scratch']
  %s0 = inlined_call_operand.hbm [shape: f32[16,768], index: 0, kind: input, shape index: {}]
  %s1 = inlined_call_operand.hbm [shape: f32[768,768], index: 1, kind: input, shape index: {}]
  %s2 = inlined_call_operand.vmem [shape: f32[1,768], index: 2, kind: input, shape index: {}]
  %s3 = inlined_call_operand.hbm [shape: f32[16,768], index: 3, kind: output, shape index: {}]
  %s4 = sld [smem:[#allocation0]]
  $region53: #{test_module_forward.1} parent=0
    _
  %s6 = ssub.s32 1, %s4
  %s7 = scalar_select 0, %s6, %s4
  $region1: #{test_module_forward.1} parent=0
    #allocation2 [shape = 'u8[49152]{0}', space=vmem, size = 0xc000, scoped, tag = 'input window, operand 0, single buffered']
    #allocation3 [shape = 's32[2]{0}', space=sflag, size = 0x8, scoped, tag = 'scoped memory for test_module_forward.1']
    #allocation4 [shape = 's32[2]{0}', space=sflag, size = 0x8, scoped, tag = 'scoped memory for test_module_forward.1']
    #allocation5 [shape = 'u8[2359296]{0}', space=vmem, size = 0x240000, scoped, tag = 'input window, operand 1']
    #allocation6 [shape = 's32[2]{0}', space=sflag, size = 0x8, scoped, tag = 'scoped memory for test_module_forward.1']
    #allocation7 [shape = 'u8[49152]{0}', space=vmem, size = 0xc000, scoped, tag = 'output window, operand 0']
    %8 = vsyncpa [#allocation3], 0
    %9 = vsyncpa [#allocation6], 0
    %s10 = scalar_lea.sflag [#allocation6], 1
    %11 = vsyncpa %s10, 0
    %12 = vsyncpa [#allocation4], 0
    %s13 = scalar_lea.sflag [#allocation4], 1
    %14 = vsyncpa %s13, 0
    loop: start=0, step=1, limit=4
    $region2: #{test_module_forward.1} parent=1 // loop_pre_header
      _
    $region3: #{test_module_forward.1} parent=1 // loop_header
      %s16 = sphi 0, %s20
      %p17 = scmp.ge.s32.totalorder %s16, 4
      %s24 = sphi 0, %s24
      %s26 = sphi 0, %s24
      %s27 = sphi 0, %s26
      %s41 = sphi 0, %s27
      %s47 = sphi 0, %s49
      %s50 = sphi 0, %s47
      %s51 = sphi 0, %s50
      %s67 = sphi 0, %s51
      %s73 = sphi 0, %s75
      %s76 = sphi 0, %s73
      %s77 = sphi 0, %s76
      %s93 = sphi 0, %s77
      %s99 = sphi 0, %s101
      %s102 = sphi 0, %s99
      %s103 = sphi 0, %s102
      %s119 = sphi 0, %s103
    $region4: #{test_module_forward.1} parent=1 // loop_header_branch
      %19 = sbr.rel (%p17) target = $region8
    $region5: #{test_module_forward.1} parent=1 // loop_body
      %s21 = ssub.s32 %s16, 1
      %s22 = ssub.s32 %s16, 2
      %s23 = sadd.s32 %s16, 1
      %s25 = sadd.s32 %s24, 1
      %p28 = scmp.eq.s32.totalorder %s16, 1
      %p29 = scmp.ne.s32.totalorder %s24, %s26
      %p30 = scmp.eq.s32.totalorder %s16, 0
      %p31 = por %p29, %p30
      %p32 = scmp.ne.s32.totalorder %s24, %s26
      %p33 = scmp.eq.s32.totalorder %s21, 1
      %p34 = por %p32, %p33
      %p35 = scmp.ne.s32.totalorder %s26, %s27
      %p36 = scmp.eq.s32.totalorder %s21, 0
      %p37 = por %p35, %p36
      %p38 = scmp.ne.s32.totalorder %s26, %s27
      %p39 = scmp.eq.s32.totalorder %s22, 1
      %p40 = por %p38, %p39
      %p42 = scmp.ne.s32.totalorder %s27, %s41
      %p43 = scmp.eq.s32.totalorder %s22, 0
      %p44 = por %p42, %p43
      %s45 = ssub.s32 %s16, %s23
      %p46 = scmp.eq.s32.totalorder %s45, 0
      %s48 = sadd.s32 %s47, 1
      %s49 = scalar_select %p46, %s47, %s48
      %p52 = pneg %p46
      %p53 = scmp.eq.s32.totalorder %s16, 1
      %p54 = por %p52, %p53
      %p55 = scmp.ne.s32.totalorder %s47, %s50
      %p56 = scmp.eq.s32.totalorder %s16, 0
      %p57 = por %p55, %p56
      %p58 = scmp.ne.s32.totalorder %s47, %s50
      %p59 = scmp.eq.s32.totalorder %s21, 1
      %p60 = por %p58, %p59
      %p61 = scmp.ne.s32.totalorder %s50, %s51
      %p62 = scmp.eq.s32.totalorder %s21, 0
      %p63 = por %p61, %p62
      %p64 = scmp.ne.s32.totalorder %s50, %s51
      %p65 = scmp.eq.s32.totalorder %s22, 1
      %p66 = por %p64, %p65
      %p68 = scmp.ne.s32.totalorder %s51, %s67
      %p69 = scmp.eq.s32.totalorder %s22, 0
      %p70 = por %p68, %p69
      %s71 = ssub.s32 %s16, %s23
      %p72 = scmp.eq.s32.totalorder %s71, 0
      %s74 = sadd.s32 %s73, 1
      %s75 = scalar_select %p72, %s73, %s74
      %p78 = pneg %p72
      %p79 = scmp.eq.s32.totalorder %s16, 1
      %p80 = por %p78, %p79
      %p81 = scmp.ne.s32.totalorder %s73, %s76
      %p82 = scmp.eq.s32.totalorder %s16, 0
      %p83 = por %p81, %p82
      %p84 = scmp.ne.s32.totalorder %s73, %s76
      %p85 = scmp.eq.s32.totalorder %s21, 1
      %p86 = por %p84, %p85
      %p87 = scmp.ne.s32.totalorder %s76, %s77
      %p88 = scmp.eq.s32.totalorder %s21, 0
      %p89 = por %p87, %p88
      %p90 = scmp.ne.s32.totalorder %s76, %s77
      %p91 = scmp.eq.s32.totalorder %s22, 1
      %p92 = por %p90, %p91
      %p94 = scmp.ne.s32.totalorder %s77, %s93
      %p95 = scmp.eq.s32.totalorder %s22, 0
      %p96 = por %p94, %p95
      %s97 = ssub.s32 %s16, %s23
      %p98 = scmp.eq.s32.totalorder %s97, 0
      %s100 = sadd.s32 %s99, 1
      %s101 = scalar_select %p98, %s99, %s100
      %p104 = pneg %p98
      %p105 = scmp.eq.s32.totalorder %s16, 1
      %p106 = por %p104, %p105
      %p107 = scmp.ne.s32.totalorder %s99, %s102
      %p108 = scmp.eq.s32.totalorder %s16, 0
      %p109 = por %p107, %p108
      %p110 = scmp.ne.s32.totalorder %s99, %s102
      %p111 = scmp.eq.s32.totalorder %s21, 1
      %p112 = por %p110, %p111
      %p113 = scmp.ne.s32.totalorder %s102, %s103
      %p114 = scmp.eq.s32.totalorder %s21, 0
      %p115 = por %p113, %p114
      %p116 = scmp.ne.s32.totalorder %s102, %s103
      %p117 = scmp.eq.s32.totalorder %s22, 1
      %p118 = por %p116, %p117
      %p120 = scmp.ne.s32.totalorder %s103, %s119
      %p121 = scmp.eq.s32.totalorder %s22, 0
      %p122 = por %p120, %p121
      %p123 = scmp.le.s32.totalorder 1, %s16
      %p124 = scmp.lt.s32.totalorder %s16, 3
      %p125 = pnand %p123, %p124
      %p126 = pneg %p125
      // Predicated region
      $region9: #{test_module_forward.1} parent=5 // pred_check
        _
      $region10: #{test_module_forward.1} parent=5 // pred_check_branch
        %128 = sbr.rel (%p125) target = $region12
      $region11: #{test_module_forward.1} parent=5 // pred_region
        %s129 = ssub.s32 %s16, 1
        // Predicated region
        $region13: #{test_module_forward.1} parent=11 // pred_check
          %p130 = pneg %p37
        $region14: #{test_module_forward.1} parent=11 // pred_check_branch
          %132 = sbr.rel (%p130) target = $region16
        $region15: #{test_module_forward.1} parent=11 // pred_region
          %s134 = ssub.s32 1536, 1536
          %135 = vsyncadd [#allocation3], %s134
          %s136 = sshll.u32 [#allocation2], 4
          %s137 = int_to_ptr.vmem [resolvable:$true] %s136
          %142 = dma.hbm_to_vmem [thread:$0]  %s0, 1536, %s137, [#allocation3], 768, 768, 48
        $region16: #{test_module_forward.1} parent=11 // pred_fallthru
          _
      $region12: #{test_module_forward.1} parent=5 // pred_fallthru
        _
      %p143 = scmp.lt.s32.totalorder %s16, 2
      // Predicated region
      $region17: #{test_module_forward.1} parent=5 // pred_check
        %p144 = pneg %p143
      $region18: #{test_module_forward.1} parent=5 // pred_check_branch
        %146 = sbr.rel (%p144) target = $region20
      $region19: #{test_module_forward.1} parent=5 // pred_region
        // Predicated region
        $region21: #{test_module_forward.1} parent=19 // pred_check
          %p147 = pneg %p57
        $region22: #{test_module_forward.1} parent=19 // pred_check_branch
          %149 = sbr.rel (%p147) target = $region24
        $region23: #{test_module_forward.1} parent=19 // pred_region
          %s150 = sand.u32 %s47, 1
          %s151 = scalar_lea.sflag [#allocation6], %s150
          %s152 = sand.u32 %s47, 1
          %s153 = smul.addr %s152, 2304
          %s154 = scalar_lea.vmem [#allocation5], %s153
          %s155 = smul.u32 3, %s16
          %s157 = ssub.s32 36864, 36864
          %158 = vsyncadd %s151, %s157
          %s159 = smul.addr %s155, 128
          %s160 = scalar_lea.hbm %s1, %s159
          %s161 = sshll.u32 %s154, 4
          %s162 = int_to_ptr.vmem [resolvable:$true] %s161
          %167 = dma.hbm_to_vmem [thread:$0]  %s160, 36864, %s162, %s151, 768, 384, 24
        $region24: #{test_module_forward.1} parent=19 // pred_fallthru
          _
        // Predicated region
        $region25: #{test_module_forward.1} parent=19 // pred_check
          %p168 = pneg %p83
        $region26: #{test_module_forward.1} parent=19 // pred_check_branch
          %170 = sbr.rel (%p168) target = $region28
        $region27: #{test_module_forward.1} parent=19 // pred_region
          %s171 = smul.u32 3, %s16
          %p172 = scmp.lt.s32.totalorder %s171, 5
          %s173 = scalar_select %p172, %s171, 5
          %s174 = scalar_lea.vmem %s2, %s173
          %s175 = smul.u32 3, %s16
        $region28: #{test_module_forward.1} parent=19 // pred_fallthru
          _
      $region20: #{test_module_forward.1} parent=5 // pred_fallthru
        _
      %p176 = scmp.le.s32.totalorder 1, %s16
      %p177 = scmp.lt.s32.totalorder %s16, 3
      %p178 = pnand %p176, %p177
      %p179 = pneg %p178
      // Predicated region
      $region29: #{test_module_forward.1} parent=5 // pred_check
        _
      $region30: #{test_module_forward.1} parent=5 // pred_check_branch
        %181 = sbr.rel (%p178) target = $region32
      $region31: #{test_module_forward.1} parent=5 // pred_region
        %s182 = ssub.s32 %s16, 1
        // Predicated region
        $region33: #{test_module_forward.1} parent=31 // pred_check
          %p183 = pneg %p37
        $region34: #{test_module_forward.1} parent=31 // pred_check_branch
          %185 = sbr.rel (%p183) target = $region36
        $region35: #{test_module_forward.1} parent=31 // pred_region
          %186 = dma.done [#allocation3], 1536
        $region36: #{test_module_forward.1} parent=31 // pred_fallthru
          _
        %s187 = sand.u32 %s50, 1
        %s188 = scalar_lea.sflag [#allocation6], %s187
        %s189 = sand.u32 %s50, 1
        %s190 = smul.addr %s189, 2304
        %s191 = scalar_lea.vmem [#allocation5], %s190
        // Predicated region
        $region37: #{test_module_forward.1} parent=31 // pred_check
          %p192 = pneg %p63
        $region38: #{test_module_forward.1} parent=31 // pred_check_branch
          %194 = sbr.rel (%p192) target = $region40
        $region39: #{test_module_forward.1} parent=31 // pred_region
          %195 = dma.done %s188, 36864
        $region40: #{test_module_forward.1} parent=31 // pred_fallthru
          _
        %p196 = pneg %p37
        %p197 = pneg %p34
        %s198 = sand.u32 %s50, 1
        %s199 = scalar_lea.sflag [#allocation6], %s198
        %s200 = sand.u32 %s50, 1
        %s201 = smul.addr %s200, 2304
        %s202 = scalar_lea.vmem [#allocation5], %s201
        %p203 = pneg %p63
        %p204 = pneg %p60
        %s205 = smul.u32 3, %s21
        %p206 = scmp.lt.s32.totalorder %s205, 5
        %s207 = scalar_select %p206, %s205, 5
        %s208 = scalar_lea.vmem %s2, %s207
        %p209 = pneg %p89
        %p210 = pneg %p86
        %p211 = pneg %p115
        %p212 = pneg %p112
        %s213 = sand.u32 %s102, 1
        %s214 = scalar_lea.sflag [#allocation4], %s213
        %s215 = sand.u32 %s102, 1
        %s216 = smul.addr %s215, 48
        %s217 = scalar_lea.vmem [#allocation7], %s216
        %s218 = smul.u32 3, %s21
        %s219 = smul.u32 3, %s21
        %p220 = scmp.lt.s32.totalorder %s219, 5
        %s221 = scalar_select %p220, %s219, 5
        %s222 = scalar_lea.vmem %s2, %s221
        %s223 = smul.u32 3, %s21
        %s224 = smul.u32 3, %s21
        %v225 = vld [vmem:[#allocation2] sm:$0xff]
        %v226 = vld [vmem:[#allocation2 + $0x8] sm:$0xff]
        %v227 = vld [vmem:[#allocation2 + $0x10] sm:$0xff]
        %v228 = vld [vmem:[#allocation2 + $0x18] sm:$0xff]
        %v229 = vld [vmem:[#allocation2 + $0x20] sm:$0xff]
        %v230 = vld [vmem:[#allocation2 + $0x28] sm:$0xff]
        %v231 = vld [vmem:[#allocation2 + $0x30] sm:$0xff]
        %v232 = vld [vmem:[#allocation2 + $0x38] sm:$0xff]
        %v233 = vld [vmem:[#allocation2 + $0x40] sm:$0xff]
        %v234 = vld [vmem:[#allocation2 + $0x48] sm:$0xff]
        %v235 = vld [vmem:[#allocation2 + $0x50] sm:$0xff]
        %v236 = vld [vmem:[#allocation2 + $0x58] sm:$0xff]
        %v237 = vld [vmem:[%s191] sm:$0xff]
        %v238 = vld [vmem:[%s191 + $0x8] sm:$0xff]
        %v239 = vld [vmem:[%s191 + $0x10] sm:$0xff]
        %v240 = vld [vmem:[%s191 + $0x18] sm:$0xff]
        %v241 = vld [vmem:[%s191 + $0x20] sm:$0xff]
        %v242 = vld [vmem:[%s191 + $0x28] sm:$0xff]
        %v243 = vld [vmem:[%s191 + $0x30] sm:$0xff]
        %v244 = vld [vmem:[%s191 + $0x38] sm:$0xff]
        %v245 = vld [vmem:[%s191 + $0x40] sm:$0xff]
        %v246 = vld [vmem:[%s191 + $0x48] sm:$0xff]
        %v247 = vld [vmem:[%s191 + $0x50] sm:$0xff]
        %v248 = vld [vmem:[%s191 + $0x58] sm:$0xff]
        %v249 = vld [vmem:[%s191 + $0x60] sm:$0xff]
        %v250 = vld [vmem:[%s191 + $0x68] sm:$0xff]
        %v251 = vld [vmem:[%s191 + $0x70] sm:$0xff]
        %v252 = vld [vmem:[%s191 + $0x78] sm:$0xff]
        %v253 = vld [vmem:[%s191 + $0x80] sm:$0xff]
        %v254 = vld [vmem:[%s191 + $0x88] sm:$0xff]
        %v255 = vld [vmem:[%s191 + $0x90] sm:$0xff]
        %v256 = vld [vmem:[%s191 + $0x98] sm:$0xff]
        %v257 = vld [vmem:[%s191 + $0xa0] sm:$0xff]
        %v258 = vld [vmem:[%s191 + $0xa8] sm:$0xff]
        %v259 = vld [vmem:[%s191 + $0xb0] sm:$0xff]
        %v260 = vld [vmem:[%s191 + $0xb8] sm:$0xff]
        %v261 = vld [vmem:[%s191 + $0xc0] sm:$0xff]
        %v262 = vld [vmem:[%s191 + $0xc8] sm:$0xff]
        %v263 = vld [vmem:[%s191 + $0xd0] sm:$0xff]
        %v264 = vld [vmem:[%s191 + $0xd8] sm:$0xff]
        %v265 = vld [vmem:[%s191 + $0xe0] sm:$0xff]
        %v266 = vld [vmem:[%s191 + $0xe8] sm:$0xff]
        %v267 = vld [vmem:[%s191 + $0xf0] sm:$0xff]
        %v268 = vld [vmem:[%s191 + $0xf8] sm:$0xff]
        %v269 = vld [vmem:[%s191 + $0x100] sm:$0xff]
        %v270 = vld [vmem:[%s191 + $0x108] sm:$0xff]
        %v271 = vld [vmem:[%s191 + $0x110] sm:$0xff]
        %v272 = vld [vmem:[%s191 + $0x118] sm:$0xff]
        %v273 = vld [vmem:[%s191 + $0x120] sm:$0xff]
        %v274 = vld [vmem:[%s191 + $0x128] sm:$0xff]
        %v275 = vld [vmem:[%s191 + $0x130] sm:$0xff]
        %v276 = vld [vmem:[%s191 + $0x138] sm:$0xff]
        %v277 = vld [vmem:[%s191 + $0x140] sm:$0xff]
        %v278 = vld [vmem:[%s191 + $0x148] sm:$0xff]
        %v279 = vld [vmem:[%s191 + $0x150] sm:$0xff]
        %v280 = vld [vmem:[%s191 + $0x158] sm:$0xff]
        %v281 = vld [vmem:[%s191 + $0x160] sm:$0xff]
        %v282 = vld [vmem:[%s191 + $0x168] sm:$0xff]
        %v283 = vld [vmem:[%s191 + $0x170] sm:$0xff]
        %v284 = vld [vmem:[%s191 + $0x178] sm:$0xff]
        %v285 = vld [vmem:[%s191 + $0x180] sm:$0xff]
        %v286 = vld [vmem:[%s191 + $0x188] sm:$0xff]
        %v287 = vld [vmem:[%s191 + $0x190] sm:$0xff]
        %v288 = vld [vmem:[%s191 + $0x198] sm:$0xff]
        %v289 = vld [vmem:[%s191 + $0x1a0] sm:$0xff]
        %v290 = vld [vmem:[%s191 + $0x1a8] sm:$0xff]
        %v291 = vld [vmem:[%s191 + $0x1b0] sm:$0xff]
        %v292 = vld [vmem:[%s191 + $0x1b8] sm:$0xff]
        %v293 = vld [vmem:[%s191 + $0x1c0] sm:$0xff]
        %v294 = vld [vmem:[%s191 + $0x1c8] sm:$0xff]
        %v295 = vld [vmem:[%s191 + $0x1d0] sm:$0xff]
        %v296 = vld [vmem:[%s191 + $0x1d8] sm:$0xff]
        %v297 = vld [vmem:[%s191 + $0x1e0] sm:$0xff]
        %v298 = vld [vmem:[%s191 + $0x1e8] sm:$0xff]
        %v299 = vld [vmem:[%s191 + $0x1f0] sm:$0xff]
        %v300 = vld [vmem:[%s191 + $0x1f8] sm:$0xff]
        %v301 = vld [vmem:[%s191 + $0x200] sm:$0xff]
        %v302 = vld [vmem:[%s191 + $0x208] sm:$0xff]
        %v303 = vld [vmem:[%s191 + $0x210] sm:$0xff]
        %v304 = vld [vmem:[%s191 + $0x218] sm:$0xff]
        %v305 = vld [vmem:[%s191 + $0x220] sm:$0xff]
        %v306 = vld [vmem:[%s191 + $0x228] sm:$0xff]
        %v307 = vld [vmem:[%s191 + $0x230] sm:$0xff]
        %v308 = vld [vmem:[%s191 + $0x238] sm:$0xff]
        %v309 = vld [vmem:[%s191 + $0x240] sm:$0xff]
        %v310 = vld [vmem:[%s191 + $0x248] sm:$0xff]
        %v311 = vld [vmem:[%s191 + $0x250] sm:$0xff]
        %v312 = vld [vmem:[%s191 + $0x258] sm:$0xff]
        %v313 = vld [vmem:[%s191 + $0x260] sm:$0xff]
        %v314 = vld [vmem:[%s191 + $0x268] sm:$0xff]
        %v315 = vld [vmem:[%s191 + $0x270] sm:$0xff]
        %v316 = vld [vmem:[%s191 + $0x278] sm:$0xff]
        %v317 = vld [vmem:[%s191 + $0x280] sm:$0xff]
        %v318 = vld [vmem:[%s191 + $0x288] sm:$0xff]
        %v319 = vld [vmem:[%s191 + $0x290] sm:$0xff]
        %v320 = vld [vmem:[%s191 + $0x298] sm:$0xff]
        %v321 = vld [vmem:[%s191 + $0x2a0] sm:$0xff]
        %v322 = vld [vmem:[%s191 + $0x2a8] sm:$0xff]
        %v323 = vld [vmem:[%s191 + $0x2b0] sm:$0xff]
        %v324 = vld [vmem:[%s191 + $0x2b8] sm:$0xff]
        %v325 = vld [vmem:[%s191 + $0x2c0] sm:$0xff]
        %v326 = vld [vmem:[%s191 + $0x2c8] sm:$0xff]
        %v327 = vld [vmem:[%s191 + $0x2d0] sm:$0xff]
        %v328 = vld [vmem:[%s191 + $0x2d8] sm:$0xff]
        %v329 = vld [vmem:[%s191 + $0x2e0] sm:$0xff]
        %v330 = vld [vmem:[%s191 + $0x2e8] sm:$0xff]
        %v331 = vld [vmem:[%s191 + $0x2f0] sm:$0xff]
        %v332 = vld [vmem:[%s191 + $0x2f8] sm:$0xff]
        %v333 = vld [vmem:[%s191 + $0x300] sm:$0xff]
        %v334 = vld [vmem:[%s191 + $0x308] sm:$0xff]
        %v335 = vld [vmem:[%s191 + $0x310] sm:$0xff]
        %v336 = vld [vmem:[%s191 + $0x318] sm:$0xff]
        %v337 = vld [vmem:[%s191 + $0x320] sm:$0xff]
        %v338 = vld [vmem:[%s191 + $0x328] sm:$0xff]
        %v339 = vld [vmem:[%s191 + $0x330] sm:$0xff]
        %v340 = vld [vmem:[%s191 + $0x338] sm:$0xff]
        %v341 = vld [vmem:[%s191 + $0x340] sm:$0xff]
        %v342 = vld [vmem:[%s191 + $0x348] sm:$0xff]
        %v343 = vld [vmem:[%s191 + $0x350] sm:$0xff]
        %v344 = vld [vmem:[%s191 + $0x358] sm:$0xff]
        %v345 = vld [vmem:[%s191 + $0x360] sm:$0xff]
        %v346 = vld [vmem:[%s191 + $0x368] sm:$0xff]
        %v347 = vld [vmem:[%s191 + $0x370] sm:$0xff]
        %v348 = vld [vmem:[%s191 + $0x378] sm:$0xff]
        %v349 = vld [vmem:[%s191 + $0x380] sm:$0xff]
        %v350 = vld [vmem:[%s191 + $0x388] sm:$0xff]
        %v351 = vld [vmem:[%s191 + $0x390] sm:$0xff]
        %v352 = vld [vmem:[%s191 + $0x398] sm:$0xff]
        %v353 = vld [vmem:[%s191 + $0x3a0] sm:$0xff]
        %v354 = vld [vmem:[%s191 + $0x3a8] sm:$0xff]
        %v355 = vld [vmem:[%s191 + $0x3b0] sm:$0xff]
        %v356 = vld [vmem:[%s191 + $0x3b8] sm:$0xff]
        %v357 = vld [vmem:[%s191 + $0x3c0] sm:$0xff]
        %v358 = vld [vmem:[%s191 + $0x3c8] sm:$0xff]
        %v359 = vld [vmem:[%s191 + $0x3d0] sm:$0xff]
        %v360 = vld [vmem:[%s191 + $0x3d8] sm:$0xff]
        %v361 = vld [vmem:[%s191 + $0x3e0] sm:$0xff]
        %v362 = vld [vmem:[%s191 + $0x3e8] sm:$0xff]
        %v363 = vld [vmem:[%s191 + $0x3f0] sm:$0xff]
        %v364 = vld [vmem:[%s191 + $0x3f8] sm:$0xff]
        %v365 = vld [vmem:[%s191 + $0x400] sm:$0xff]
        %v366 = vld [vmem:[%s191 + $0x408] sm:$0xff]
        %v367 = vld [vmem:[%s191 + $0x410] sm:$0xff]
        %v368 = vld [vmem:[%s191 + $0x418] sm:$0xff]
        %v369 = vld [vmem:[%s191 + $0x420] sm:$0xff]
        %v370 = vld [vmem:[%s191 + $0x428] sm:$0xff]
        %v371 = vld [vmem:[%s191 + $0x430] sm:$0xff]
        %v372 = vld [vmem:[%s191 + $0x438] sm:$0xff]
        %v373 = vld [vmem:[%s191 + $0x440] sm:$0xff]
        %v374 = vld [vmem:[%s191 + $0x448] sm:$0xff]
        %v375 = vld [vmem:[%s191 + $0x450] sm:$0xff]
        %v376 = vld [vmem:[%s191 + $0x458] sm:$0xff]
        %v377 = vld [vmem:[%s191 + $0x460] sm:$0xff]
        %v378 = vld [vmem:[%s191 + $0x468] sm:$0xff]
        %v379 = vld [vmem:[%s191 + $0x470] sm:$0xff]
        %v380 = vld [vmem:[%s191 + $0x478] sm:$0xff]
        %v381 = vld [vmem:[%s191 + $0x480] sm:$0xff]
        %v382 = vld [vmem:[%s191 + $0x488] sm:$0xff]
        %v383 = vld [vmem:[%s191 + $0x490] sm:$0xff]
        %v384 = vld [vmem:[%s191 + $0x498] sm:$0xff]
        %v385 = vld [vmem:[%s191 + $0x4a0] sm:$0xff]
        %v386 = vld [vmem:[%s191 + $0x4a8] sm:$0xff]
        %v387 = vld [vmem:[%s191 + $0x4b0] sm:$0xff]
        %v388 = vld [vmem:[%s191 + $0x4b8] sm:$0xff]
        %v389 = vld [vmem:[%s191 + $0x4c0] sm:$0xff]
        %v390 = vld [vmem:[%s191 + $0x4c8] sm:$0xff]
        %v391 = vld [vmem:[%s191 + $0x4d0] sm:$0xff]
        %v392 = vld [vmem:[%s191 + $0x4d8] sm:$0xff]
        %v393 = vld [vmem:[%s191 + $0x4e0] sm:$0xff]
        %v394 = vld [vmem:[%s191 + $0x4e8] sm:$0xff]
        %v395 = vld [vmem:[%s191 + $0x4f0] sm:$0xff]
        %v396 = vld [vmem:[%s191 + $0x4f8] sm:$0xff]
        %v397 = vld [vmem:[%s191 + $0x500] sm:$0xff]
        %v398 = vld [vmem:[%s191 + $0x508] sm:$0xff]
        %v399 = vld [vmem:[%s191 + $0x510] sm:$0xff]
        %v400 = vld [vmem:[%s191 + $0x518] sm:$0xff]
        %v401 = vld [vmem:[%s191 + $0x520] sm:$0xff]
        %v402 = vld [vmem:[%s191 + $0x528] sm:$0xff]
        %v403 = vld [vmem:[%s191 + $0x530] sm:$0xff]
        %v404 = vld [vmem:[%s191 + $0x538] sm:$0xff]
        %v405 = vld [vmem:[%s191 + $0x540] sm:$0xff]
        %v406 = vld [vmem:[%s191 + $0x548] sm:$0xff]
        %v407 = vld [vmem:[%s191 + $0x550] sm:$0xff]
        %v408 = vld [vmem:[%s191 + $0x558] sm:$0xff]
        %v409 = vld [vmem:[%s191 + $0x560] sm:$0xff]
        %v410 = vld [vmem:[%s191 + $0x568] sm:$0xff]
        %v411 = vld [vmem:[%s191 + $0x570] sm:$0xff]
        %v412 = vld [vmem:[%s191 + $0x578] sm:$0xff]
        %v413 = vld [vmem:[%s191 + $0x580] sm:$0xff]
        %v414 = vld [vmem:[%s191 + $0x588] sm:$0xff]
        %v415 = vld [vmem:[%s191 + $0x590] sm:$0xff]
        %v416 = vld [vmem:[%s191 + $0x598] sm:$0xff]
        %v417 = vld [vmem:[%s191 + $0x5a0] sm:$0xff]
        %v418 = vld [vmem:[%s191 + $0x5a8] sm:$0xff]
        %v419 = vld [vmem:[%s191 + $0x5b0] sm:$0xff]
        %v420 = vld [vmem:[%s191 + $0x5b8] sm:$0xff]
        %v421 = vld [vmem:[%s191 + $0x5c0] sm:$0xff]
        %v422 = vld [vmem:[%s191 + $0x5c8] sm:$0xff]
        %v423 = vld [vmem:[%s191 + $0x5d0] sm:$0xff]
        %v424 = vld [vmem:[%s191 + $0x5d8] sm:$0xff]
        %v425 = vld [vmem:[%s191 + $0x5e0] sm:$0xff]
        %v426 = vld [vmem:[%s191 + $0x5e8] sm:$0xff]
        %v427 = vld [vmem:[%s191 + $0x5f0] sm:$0xff]
        %v428 = vld [vmem:[%s191 + $0x5f8] sm:$0xff]
        %v429 = vld [vmem:[%s191 + $0x600] sm:$0xff]
        %v430 = vld [vmem:[%s191 + $0x608] sm:$0xff]
        %v431 = vld [vmem:[%s191 + $0x610] sm:$0xff]
        %v432 = vld [vmem:[%s191 + $0x618] sm:$0xff]
        %v433 = vld [vmem:[%s191 + $0x620] sm:$0xff]
        %v434 = vld [vmem:[%s191 + $0x628] sm:$0xff]
        %v435 = vld [vmem:[%s191 + $0x630] sm:$0xff]
        %v436 = vld [vmem:[%s191 + $0x638] sm:$0xff]
        %v437 = vld [vmem:[%s191 + $0x640] sm:$0xff]
        %v438 = vld [vmem:[%s191 + $0x648] sm:$0xff]
        %v439 = vld [vmem:[%s191 + $0x650] sm:$0xff]
        %v440 = vld [vmem:[%s191 + $0x658] sm:$0xff]
        %v441 = vld [vmem:[%s191 + $0x660] sm:$0xff]
        %v442 = vld [vmem:[%s191 + $0x668] sm:$0xff]
        %v443 = vld [vmem:[%s191 + $0x670] sm:$0xff]
        %v444 = vld [vmem:[%s191 + $0x678] sm:$0xff]
        %v445 = vld [vmem:[%s191 + $0x680] sm:$0xff]
        %v446 = vld [vmem:[%s191 + $0x688] sm:$0xff]
        %v447 = vld [vmem:[%s191 + $0x690] sm:$0xff]
        %v448 = vld [vmem:[%s191 + $0x698] sm:$0xff]
        %v449 = vld [vmem:[%s191 + $0x6a0] sm:$0xff]
        %v450 = vld [vmem:[%s191 + $0x6a8] sm:$0xff]
        %v451 = vld [vmem:[%s191 + $0x6b0] sm:$0xff]
        %v452 = vld [vmem:[%s191 + $0x6b8] sm:$0xff]
        %v453 = vld [vmem:[%s191 + $0x6c0] sm:$0xff]
        %v454 = vld [vmem:[%s191 + $0x6c8] sm:$0xff]
        %v455 = vld [vmem:[%s191 + $0x6d0] sm:$0xff]
        %v456 = vld [vmem:[%s191 + $0x6d8] sm:$0xff]
        %v457 = vld [vmem:[%s191 + $0x6e0] sm:$0xff]
        %v458 = vld [vmem:[%s191 + $0x6e8] sm:$0xff]
        %v459 = vld [vmem:[%s191 + $0x6f0] sm:$0xff]
        %v460 = vld [vmem:[%s191 + $0x6f8] sm:$0xff]
        %v461 = vld [vmem:[%s191 + $0x700] sm:$0xff]
        %v462 = vld [vmem:[%s191 + $0x708] sm:$0xff]
        %v463 = vld [vmem:[%s191 + $0x710] sm:$0xff]
        %v464 = vld [vmem:[%s191 + $0x718] sm:$0xff]
        %v465 = vld [vmem:[%s191 + $0x720] sm:$0xff]
        %v466 = vld [vmem:[%s191 + $0x728] sm:$0xff]
        %v467 = vld [vmem:[%s191 + $0x730] sm:$0xff]
        %v468 = vld [vmem:[%s191 + $0x738] sm:$0xff]
        %v469 = vld [vmem:[%s191 + $0x740] sm:$0xff]
        %v470 = vld [vmem:[%s191 + $0x748] sm:$0xff]
        %v471 = vld [vmem:[%s191 + $0x750] sm:$0xff]
        %v472 = vld [vmem:[%s191 + $0x758] sm:$0xff]
        %v473 = vld [vmem:[%s191 + $0x760] sm:$0xff]
        %v474 = vld [vmem:[%s191 + $0x768] sm:$0xff]
        %v475 = vld [vmem:[%s191 + $0x770] sm:$0xff]
        %v476 = vld [vmem:[%s191 + $0x778] sm:$0xff]
        %v477 = vld [vmem:[%s191 + $0x780] sm:$0xff]
        %v478 = vld [vmem:[%s191 + $0x788] sm:$0xff]
        %v479 = vld [vmem:[%s191 + $0x790] sm:$0xff]
        %v480 = vld [vmem:[%s191 + $0x798] sm:$0xff]
        %v481 = vld [vmem:[%s191 + $0x7a0] sm:$0xff]
        %v482 = vld [vmem:[%s191 + $0x7a8] sm:$0xff]
        %v483 = vld [vmem:[%s191 + $0x7b0] sm:$0xff]
        %v484 = vld [vmem:[%s191 + $0x7b8] sm:$0xff]
        %v485 = vld [vmem:[%s191 + $0x7c0] sm:$0xff]
        %v486 = vld [vmem:[%s191 + $0x7c8] sm:$0xff]
        %v487 = vld [vmem:[%s191 + $0x7d0] sm:$0xff]
        %v488 = vld [vmem:[%s191 + $0x7d8] sm:$0xff]
        %v489 = vld [vmem:[%s191 + $0x7e0] sm:$0xff]
        %v490 = vld [vmem:[%s191 + $0x7e8] sm:$0xff]
        %v491 = vld [vmem:[%s191 + $0x7f0] sm:$0xff]
        %v492 = vld [vmem:[%s191 + $0x7f8] sm:$0xff]
        %v493 = vld [vmem:[%s191 + $0x800] sm:$0xff]
        %v494 = vld [vmem:[%s191 + $0x808] sm:$0xff]
        %v495 = vld [vmem:[%s191 + $0x810] sm:$0xff]
        %v496 = vld [vmem:[%s191 + $0x818] sm:$0xff]
        %v497 = vld [vmem:[%s191 + $0x820] sm:$0xff]
        %v498 = vld [vmem:[%s191 + $0x828] sm:$0xff]
        %v499 = vld [vmem:[%s191 + $0x830] sm:$0xff]
        %v500 = vld [vmem:[%s191 + $0x838] sm:$0xff]
        %v501 = vld [vmem:[%s191 + $0x840] sm:$0xff]
        %v502 = vld [vmem:[%s191 + $0x848] sm:$0xff]
        %v503 = vld [vmem:[%s191 + $0x850] sm:$0xff]
        %v504 = vld [vmem:[%s191 + $0x858] sm:$0xff]
        %v505 = vld [vmem:[%s191 + $0x860] sm:$0xff]
        %v506 = vld [vmem:[%s191 + $0x868] sm:$0xff]
        %v507 = vld [vmem:[%s191 + $0x870] sm:$0xff]
        %v508 = vld [vmem:[%s191 + $0x878] sm:$0xff]
        %v509 = vld [vmem:[%s191 + $0x880] sm:$0xff]
        %v510 = vld [vmem:[%s191 + $0x888] sm:$0xff]
        %v511 = vld [vmem:[%s191 + $0x890] sm:$0xff]
        %v512 = vld [vmem:[%s191 + $0x898] sm:$0xff]
        %v513 = vld [vmem:[%s191 + $0x8a0] sm:$0xff]
        %v514 = vld [vmem:[%s191 + $0x8a8] sm:$0xff]
        %v515 = vld [vmem:[%s191 + $0x8b0] sm:$0xff]
        %v516 = vld [vmem:[%s191 + $0x8b8] sm:$0xff]
        %v517 = vld [vmem:[%s191 + $0x8c0] sm:$0xff]
        %v518 = vld [vmem:[%s191 + $0x8c8] sm:$0xff]
        %v519 = vld [vmem:[%s191 + $0x8d0] sm:$0xff]
        %v520 = vld [vmem:[%s191 + $0x8d8] sm:$0xff]
        %v521 = vld [vmem:[%s191 + $0x8e0] sm:$0xff]
        %v522 = vld [vmem:[%s191 + $0x8e8] sm:$0xff]
        %v523 = vld [vmem:[%s191 + $0x8f0] sm:$0xff]
        %v524 = vld [vmem:[%s191 + $0x8f8] sm:$0xff]
        %v525 = vld [vmem:[%s222] sm:$0x7]
        %v527 = vlaneseq
        %v528 = vshrl.u32 %v527, 7
        %v529 = vsub.s32 0, %v528
        %v530 = vrot.slane %v525, %v529
        %v531 = vlaneseq
        %v532 = vshrl.u32 %v531, 7
        %v533 = vsub.s32 1, %v532
        %v534 = vrot.slane %v525, %v533
        %v535 = vlaneseq
        %v536 = vshrl.u32 %v535, 7
        %v537 = vsub.s32 2, %v536
        %v538 = vrot.slane %v525, %v537
        %542 = vmatprep.subr.mxu0 %v238
        %543 = vmatpush1.msra.mxu0 %v237
        %544 = vmatprep.subr.mxu0 %v241
        %545 = vmatpush1.msra.mxu0 %v240
        %546 = vmatprep.subr.mxu0 %v244
        %547 = vmatpush1.msra.mxu0 %v243
        %548 = vmatprep.subr.mxu0 %v247
        %549 = vmatpush1.msra.mxu0 %v246
        %550 = vmatprep.subr.mxu0 %v250
        %551 = vmatpush1.msra.mxu0 %v249
        %552 = vmatprep.subr.mxu0 %v253
        %553 = vmatpush1.msra.mxu0 %v252
        %554 = vmatprep.subr.mxu0 %v256
        %555 = vmatpush1.msra.mxu0 %v255
        %556 = vmatprep.subr.mxu0 %v259
        %557 = vmatpush1.msra.mxu0 %v258
        %558 = vmatprep.subr.mxu0 %v262
        %559 = vmatpush1.msra.mxu0 %v261
        %560 = vmatprep.subr.mxu0 %v265
        %561 = vmatpush1.msra.mxu0 %v264
        %562 = vmatprep.subr.mxu0 %v268
        %563 = vmatpush1.msra.mxu0 %v267
        %564 = vmatprep.subr.mxu0 %v271
        %565 = vmatpush1.msra.mxu0 %v270
        %566 = vmatprep.subr.mxu0 %v274
        %567 = vmatpush1.msra.mxu0 %v273
        %568 = vmatprep.subr.mxu0 %v277
        %569 = vmatpush1.msra.mxu0 %v276
        %570 = vmatprep.subr.mxu0 %v280
        %571 = vmatpush1.msra.mxu0 %v279
        %572 = vmatprep.subr.mxu0 %v283
        %573 = vmatpush1.msra.mxu0 %v282
        %574 = vmatprep.subr.mxu0 %v286
        %575 = vmatpush1.msra.mxu0 %v285
        %576 = vmatprep.subr.mxu0 %v289
        %577 = vmatpush1.msra.mxu0 %v288
        %578 = vmatprep.subr.mxu0 %v292
        %579 = vmatpush1.msra.mxu0 %v291
        %580 = vmatprep.subr.mxu0 %v295
        %581 = vmatpush1.msra.mxu0 %v294
        %582 = vmatprep.subr.mxu0 %v298
        %583 = vmatpush1.msra.mxu0 %v297
        %584 = vmatprep.subr.mxu0 %v301
        %585 = vmatpush1.msra.mxu0 %v300
        %586 = vmatprep.subr.mxu0 %v304
        %587 = vmatpush1.msra.mxu0 %v303
        %588 = vmatprep.subr.mxu0 %v307
        %589 = vmatpush1.msra.mxu0 %v306
        %590 = vmatprep.subr.mxu0 %v310
        %591 = vmatpush1.msra.mxu0 %v309
        %592 = vmatprep.subr.mxu0 %v313
        %593 = vmatpush1.msra.mxu0 %v312
        %594 = vmatprep.subr.mxu0 %v316
        %595 = vmatpush1.msra.mxu0 %v315
        %596 = vmatprep.subr.mxu0 %v319
        %597 = vmatpush1.msra.mxu0 %v318
        %598 = vmatprep.subr.mxu0 %v322
        %599 = vmatpush1.msra.mxu0 %v321
        %600 = vmatprep.subr.mxu0 %v325
        %601 = vmatpush1.msra.mxu0 %v324
        %602 = vmatprep.subr.mxu0 %v328
        %603 = vmatpush1.msra.mxu0 %v327
        %604 = vmatprep.subr.mxu0 %v331
        %605 = vmatpush1.msra.mxu0 %v330
        %606 = vmatprep.mubr.f32.mxu0 %v226
        %607 = vmatmul.mubr.f32.gmra.mrb[0].mxu0 %v225
        %v608 = vpop.f32.mrb[0].mxu0
        %v609 = vadd.f32 %v530, %v608
        %v610 = vpop.f32.mrb[0].mxu0
        %v611 = vadd.f32 %v534, %v610
        %612 = vmatprep.mubr.f32.mxu0 %v232
        %613 = vmatmul.mubr.f32.gmra.mrb[0].mxu0 %v231
        %v614 = vpop.f32.mrb[0].mxu0
        %v615 = vadd.f32 %v530, %v614
        %v616 = vpop.f32.mrb[0].mxu0
        %v617 = vadd.f32 %v534, %v616
        %618 = vdwg.mxu0
        %619 = vmatprep.subr.mxu0 %v334
        %620 = vmatpush1.msra.mxu0 %v333
        %621 = vmatprep.subr.mxu0 %v337
        %622 = vmatpush1.msra.mxu0 %v336
        %623 = vmatprep.subr.mxu0 %v340
        %624 = vmatpush1.msra.mxu0 %v339
        %625 = vmatprep.subr.mxu0 %v343
        %626 = vmatpush1.msra.mxu0 %v342
        %627 = vmatprep.subr.mxu0 %v346
        %628 = vmatpush1.msra.mxu0 %v345
        %629 = vmatprep.subr.mxu0 %v349
        %630 = vmatpush1.msra.mxu0 %v348
        %631 = vmatprep.subr.mxu0 %v352
        %632 = vmatpush1.msra.mxu0 %v351
        %633 = vmatprep.subr.mxu0 %v355
        %634 = vmatpush1.msra.mxu0 %v354
        %635 = vmatprep.subr.mxu0 %v358
        %636 = vmatpush1.msra.mxu0 %v357
        %637 = vmatprep.subr.mxu0 %v361
        %638 = vmatpush1.msra.mxu0 %v360
        %639 = vmatprep.subr.mxu0 %v364
        %640 = vmatpush1.msra.mxu0 %v363
        %641 = vmatprep.subr.mxu0 %v367
        %642 = vmatpush1.msra.mxu0 %v366
        %643 = vmatprep.subr.mxu0 %v370
        %644 = vmatpush1.msra.mxu0 %v369
        %645 = vmatprep.subr.mxu0 %v373
        %646 = vmatpush1.msra.mxu0 %v372
        %647 = vmatprep.subr.mxu0 %v376
        %648 = vmatpush1.msra.mxu0 %v375
        %649 = vmatprep.subr.mxu0 %v379
        %650 = vmatpush1.msra.mxu0 %v378
        %651 = vmatprep.subr.mxu0 %v382
        %652 = vmatpush1.msra.mxu0 %v381
        %653 = vmatprep.subr.mxu0 %v385
        %654 = vmatpush1.msra.mxu0 %v384
        %655 = vmatprep.subr.mxu0 %v388
        %656 = vmatpush1.msra.mxu0 %v387
        %657 = vmatprep.subr.mxu0 %v391
        %658 = vmatpush1.msra.mxu0 %v390
        %659 = vmatprep.subr.mxu0 %v394
        %660 = vmatpush1.msra.mxu0 %v393
        %661 = vmatprep.subr.mxu0 %v397
        %662 = vmatpush1.msra.mxu0 %v396
        %663 = vmatprep.subr.mxu0 %v400
        %664 = vmatpush1.msra.mxu0 %v399
        %665 = vmatprep.subr.mxu0 %v403
        %666 = vmatpush1.msra.mxu0 %v402
        %667 = vmatprep.subr.mxu0 %v406
        %668 = vmatpush1.msra.mxu0 %v405
        %669 = vmatprep.subr.mxu0 %v409
        %670 = vmatpush1.msra.mxu0 %v408
        %671 = vmatprep.subr.mxu0 %v412
        %672 = vmatpush1.msra.mxu0 %v411
        %673 = vmatprep.subr.mxu0 %v415
        %674 = vmatpush1.msra.mxu0 %v414
        %675 = vmatprep.subr.mxu0 %v418
        %676 = vmatpush1.msra.mxu0 %v417
        %677 = vmatprep.subr.mxu0 %v421
        %678 = vmatpush1.msra.mxu0 %v420
        %679 = vmatprep.subr.mxu0 %v424
        %680 = vmatpush1.msra.mxu0 %v423
        %681 = vmatprep.subr.mxu0 %v427
        %682 = vmatpush1.msra.mxu0 %v426
        %683 = vmatprep.mubr.f32.mxu0 %v228
        %684 = vmatmul.mubr.f32.gmra.mrb[0].mxu0 %v227
        %v685 = vpop.f32.mrb[0].mxu0
        %v686 = vadd.f32 %v609, %v685
        %v687 = vpop.f32.mrb[0].mxu0
        %v688 = vadd.f32 %v611, %v687
        %689 = vmatprep.mubr.f32.mxu0 %v234
        %690 = vmatmul.mubr.f32.gmra.mrb[0].mxu0 %v233
        %v691 = vpop.f32.mrb[0].mxu0
        %v692 = vadd.f32 %v615, %v691
        %v693 = vpop.f32.mrb[0].mxu0
        %v694 = vadd.f32 %v617, %v693
        %695 = vdwg.mxu0
        %696 = vmatprep.subr.mxu0 %v430
        %697 = vmatpush1.msra.mxu0 %v429
        %698 = vmatprep.subr.mxu0 %v433
        %699 = vmatpush1.msra.mxu0 %v432
        %700 = vmatprep.subr.mxu0 %v436
        %701 = vmatpush1.msra.mxu0 %v435
        %702 = vmatprep.subr.mxu0 %v439
        %703 = vmatpush1.msra.mxu0 %v438
        %704 = vmatprep.subr.mxu0 %v442
        %705 = vmatpush1.msra.mxu0 %v441
        %706 = vmatprep.subr.mxu0 %v445
        %707 = vmatpush1.msra.mxu0 %v444
        %708 = vmatprep.subr.mxu0 %v448
        %709 = vmatpush1.msra.mxu0 %v447
        %710 = vmatprep.subr.mxu0 %v451
        %711 = vmatpush1.msra.mxu0 %v450
        %712 = vmatprep.subr.mxu0 %v454
        %713 = vmatpush1.msra.mxu0 %v453
        %714 = vmatprep.subr.mxu0 %v457
        %715 = vmatpush1.msra.mxu0 %v456
        %716 = vmatprep.subr.mxu0 %v460
        %717 = vmatpush1.msra.mxu0 %v459
        %718 = vmatprep.subr.mxu0 %v463
        %719 = vmatpush1.msra.mxu0 %v462
        %720 = vmatprep.subr.mxu0 %v466
        %721 = vmatpush1.msra.mxu0 %v465
        %722 = vmatprep.subr.mxu0 %v469
        %723 = vmatpush1.msra.mxu0 %v468
        %724 = vmatprep.subr.mxu0 %v472
        %725 = vmatpush1.msra.mxu0 %v471
        %726 = vmatprep.subr.mxu0 %v475
        %727 = vmatpush1.msra.mxu0 %v474
        %728 = vmatprep.subr.mxu0 %v478
        %729 = vmatpush1.msra.mxu0 %v477
        %730 = vmatprep.subr.mxu0 %v481
        %731 = vmatpush1.msra.mxu0 %v480
        %732 = vmatprep.subr.mxu0 %v484
        %733 = vmatpush1.msra.mxu0 %v483
        %734 = vmatprep.subr.mxu0 %v487
        %735 = vmatpush1.msra.mxu0 %v486
        %736 = vmatprep.subr.mxu0 %v490
        %737 = vmatpush1.msra.mxu0 %v489
        %738 = vmatprep.subr.mxu0 %v493
        %739 = vmatpush1.msra.mxu0 %v492
        %740 = vmatprep.subr.mxu0 %v496
        %741 = vmatpush1.msra.mxu0 %v495
        %742 = vmatprep.subr.mxu0 %v499
        %743 = vmatpush1.msra.mxu0 %v498
        %744 = vmatprep.subr.mxu0 %v502
        %745 = vmatpush1.msra.mxu0 %v501
        %746 = vmatprep.subr.mxu0 %v505
        %747 = vmatpush1.msra.mxu0 %v504
        %748 = vmatprep.subr.mxu0 %v508
        %749 = vmatpush1.msra.mxu0 %v507
        %750 = vmatprep.subr.mxu0 %v511
        %751 = vmatpush1.msra.mxu0 %v510
        %752 = vmatprep.subr.mxu0 %v514
        %753 = vmatpush1.msra.mxu0 %v513
        %754 = vmatprep.subr.mxu0 %v517
        %755 = vmatpush1.msra.mxu0 %v516
        %756 = vmatprep.subr.mxu0 %v520
        %757 = vmatpush1.msra.mxu0 %v519
        %758 = vmatprep.subr.mxu0 %v523
        %759 = vmatpush1.msra.mxu0 %v522
        %760 = vmatprep.mubr.f32.mxu0 %v230
        %761 = vmatmul.mubr.f32.gmra.mrb[0].mxu0 %v229
        %v762 = vpop.f32.mrb[0].mxu0
        %v763 = vadd.f32 %v686, %v762
        %v764 = vpop.f32.mrb[0].mxu0
        %v765 = vadd.f32 %v688, %v764
        %766 = vmatprep.mubr.f32.mxu0 %v236
        %767 = vmatmul.mubr.f32.gmra.mrb[0].mxu0 %v235
        %v768 = vpop.f32.mrb[0].mxu0
        %v769 = vadd.f32 %v692, %v768
        %v770 = vpop.f32.mrb[0].mxu0
        %v771 = vadd.f32 %v694, %v770
        %772 = vdwg.mxu0
        %773 = vmatprep.subr.mxu0 0.0
        %774 = vmatpush1.msra.mxu0 %v239
        %775 = vmatprep.subr.mxu0 0.0
        %776 = vmatpush1.msra.mxu0 %v242
        %777 = vmatprep.subr.mxu0 0.0
        %778 = vmatpush1.msra.mxu0 %v245
        %779 = vmatprep.subr.mxu0 0.0
        %780 = vmatpush1.msra.mxu0 %v248
        %781 = vmatprep.subr.mxu0 0.0
        %782 = vmatpush1.msra.mxu0 %v251
        %783 = vmatprep.subr.mxu0 0.0
        %784 = vmatpush1.msra.mxu0 %v254
        %785 = vmatprep.subr.mxu0 0.0
        %786 = vmatpush1.msra.mxu0 %v257
        %787 = vmatprep.subr.mxu0 0.0
        %788 = vmatpush1.msra.mxu0 %v260
        %789 = vmatprep.subr.mxu0 0.0
        %790 = vmatpush1.msra.mxu0 %v263
        %791 = vmatprep.subr.mxu0 0.0
        %792 = vmatpush1.msra.mxu0 %v266
        %793 = vmatprep.subr.mxu0 0.0
        %794 = vmatpush1.msra.mxu0 %v269
        %795 = vmatprep.subr.mxu0 0.0
        %796 = vmatpush1.msra.mxu0 %v272
        %797 = vmatprep.subr.mxu0 0.0
        %798 = vmatpush1.msra.mxu0 %v275
        %799 = vmatprep.subr.mxu0 0.0
        %800 = vmatpush1.msra.mxu0 %v278
        %801 = vmatprep.subr.mxu0 0.0
        %802 = vmatpush1.msra.mxu0 %v281
        %803 = vmatprep.subr.mxu0 0.0
        %804 = vmatpush1.msra.mxu0 %v284
        %805 = vmatprep.subr.mxu0 0.0
        %806 = vmatpush1.msra.mxu0 %v287
        %807 = vmatprep.subr.mxu0 0.0
        %808 = vmatpush1.msra.mxu0 %v290
        %809 = vmatprep.subr.mxu0 0.0
        %810 = vmatpush1.msra.mxu0 %v293
        %811 = vmatprep.subr.mxu0 0.0
        %812 = vmatpush1.msra.mxu0 %v296
        %813 = vmatprep.subr.mxu0 0.0
        %814 = vmatpush1.msra.mxu0 %v299
        %815 = vmatprep.subr.mxu0 0.0
        %816 = vmatpush1.msra.mxu0 %v302
        %817 = vmatprep.subr.mxu0 0.0
        %818 = vmatpush1.msra.mxu0 %v305
        %819 = vmatprep.subr.mxu0 0.0
        %820 = vmatpush1.msra.mxu0 %v308
        %821 = vmatprep.subr.mxu0 0.0
        %822 = vmatpush1.msra.mxu0 %v311
        %823 = vmatprep.subr.mxu0 0.0
        %824 = vmatpush1.msra.mxu0 %v314
        %825 = vmatprep.subr.mxu0 0.0
        %826 = vmatpush1.msra.mxu0 %v317
        %827 = vmatprep.subr.mxu0 0.0
        %828 = vmatpush1.msra.mxu0 %v320
        %829 = vmatprep.subr.mxu0 0.0
        %830 = vmatpush1.msra.mxu0 %v323
        %831 = vmatprep.subr.mxu0 0.0
        %832 = vmatpush1.msra.mxu0 %v326
        %833 = vmatprep.subr.mxu0 0.0
        %834 = vmatpush1.msra.mxu0 %v329
        %835 = vmatprep.subr.mxu0 0.0
        %836 = vmatpush1.msra.mxu0 %v332
        %837 = vmatprep.mubr.f32.mxu0 %v226
        %838 = vmatmul.mubr.f32.gmra.mrb[0].mxu0 %v225
        %v839 = vpop.f32.mrb[0].mxu0
        %v840 = vadd.f32 %v538, %v839
        %v841 = vpop.f32.mrb[0].mxu0
        %842 = vmatprep.mubr.f32.mxu0 %v232
        %843 = vmatmul.mubr.f32.gmra.mrb[0].mxu0 %v231
        %v844 = vpop.f32.mrb[0].mxu0
        %v845 = vadd.f32 %v538, %v844
        %v846 = vpop.f32.mrb[0].mxu0
        %847 = vdwg.mxu0
        %848 = vmatprep.subr.mxu0 0.0
        %849 = vmatpush1.msra.mxu0 %v335
        %850 = vmatprep.subr.mxu0 0.0
        %851 = vmatpush1.msra.mxu0 %v338
        %852 = vmatprep.subr.mxu0 0.0
        %853 = vmatpush1.msra.mxu0 %v341
        %854 = vmatprep.subr.mxu0 0.0
        %855 = vmatpush1.msra.mxu0 %v344
        %856 = vmatprep.subr.mxu0 0.0
        %857 = vmatpush1.msra.mxu0 %v347
        %858 = vmatprep.subr.mxu0 0.0
        %859 = vmatpush1.msra.mxu0 %v350
        %860 = vmatprep.subr.mxu0 0.0
        %861 = vmatpush1.msra.mxu0 %v353
        %862 = vmatprep.subr.mxu0 0.0
        %863 = vmatpush1.msra.mxu0 %v356
        %864 = vmatprep.subr.mxu0 0.0
        %865 = vmatpush1.msra.mxu0 %v359
        %866 = vmatprep.subr.mxu0 0.0
        %867 = vmatpush1.msra.mxu0 %v362
        %868 = vmatprep.subr.mxu0 0.0
        %869 = vmatpush1.msra.mxu0 %v365
        %870 = vmatprep.subr.mxu0 0.0
        %871 = vmatpush1.msra.mxu0 %v368
        %872 = vmatprep.subr.mxu0 0.0
        %873 = vmatpush1.msra.mxu0 %v371
        %874 = vmatprep.subr.mxu0 0.0
        %875 = vmatpush1.msra.mxu0 %v374
        %876 = vmatprep.subr.mxu0 0.0
        %877 = vmatpush1.msra.mxu0 %v377
        %878 = vmatprep.subr.mxu0 0.0
        %879 = vmatpush1.msra.mxu0 %v380
        %880 = vmatprep.subr.mxu0 0.0
        %881 = vmatpush1.msra.mxu0 %v383
        %882 = vmatprep.subr.mxu0 0.0
        %883 = vmatpush1.msra.mxu0 %v386
        %884 = vmatprep.subr.mxu0 0.0
        %885 = vmatpush1.msra.mxu0 %v389
        %886 = vmatprep.subr.mxu0 0.0
        %887 = vmatpush1.msra.mxu0 %v392
        %888 = vmatprep.subr.mxu0 0.0
        %889 = vmatpush1.msra.mxu0 %v395
        %890 = vmatprep.subr.mxu0 0.0
        %891 = vmatpush1.msra.mxu0 %v398
        %892 = vmatprep.subr.mxu0 0.0
        %893 = vmatpush1.msra.mxu0 %v401
        %894 = vmatprep.subr.mxu0 0.0
        %895 = vmatpush1.msra.mxu0 %v404
        %896 = vmatprep.subr.mxu0 0.0
        %897 = vmatpush1.msra.mxu0 %v407
        %898 = vmatprep.subr.mxu0 0.0
        %899 = vmatpush1.msra.mxu0 %v410
        %900 = vmatprep.subr.mxu0 0.0
        %901 = vmatpush1.msra.mxu0 %v413
        %902 = vmatprep.subr.mxu0 0.0
        %903 = vmatpush1.msra.mxu0 %v416
        %904 = vmatprep.subr.mxu0 0.0
        %905 = vmatpush1.msra.mxu0 %v419
        %906 = vmatprep.subr.mxu0 0.0
        %907 = vmatpush1.msra.mxu0 %v422
        %908 = vmatprep.subr.mxu0 0.0
        %909 = vmatpush1.msra.mxu0 %v425
        %910 = vmatprep.subr.mxu0 0.0
        %911 = vmatpush1.msra.mxu0 %v428
        %912 = vmatprep.mubr.f32.mxu0 %v228
        %913 = vmatmul.mubr.f32.gmra.mrb[0].mxu0 %v227
        %v914 = vpop.f32.mrb[0].mxu0
        %v915 = vadd.f32 %v840, %v914
        %v916 = vpop.f32.mrb[0].mxu0
        %917 = vmatprep.mubr.f32.mxu0 %v234
        %918 = vmatmul.mubr.f32.gmra.mrb[0].mxu0 %v233
        %v919 = vpop.f32.mrb[0].mxu0
        %v920 = vadd.f32 %v845, %v919
        %v921 = vpop.f32.mrb[0].mxu0
        %922 = vdwg.mxu0
        %923 = vmatprep.subr.mxu0 0.0
        %924 = vmatpush1.msra.mxu0 %v431
        %925 = vmatprep.subr.mxu0 0.0
        %926 = vmatpush1.msra.mxu0 %v434
        %927 = vmatprep.subr.mxu0 0.0
        %928 = vmatpush1.msra.mxu0 %v437
        %929 = vmatprep.subr.mxu0 0.0
        %930 = vmatpush1.msra.mxu0 %v440
        %931 = vmatprep.subr.mxu0 0.0
        %932 = vmatpush1.msra.mxu0 %v443
        %933 = vmatprep.subr.mxu0 0.0
        %934 = vmatpush1.msra.mxu0 %v446
        %935 = vmatprep.subr.mxu0 0.0
        %936 = vmatpush1.msra.mxu0 %v449
        %937 = vmatprep.subr.mxu0 0.0
        %938 = vmatpush1.msra.mxu0 %v452
        %939 = vmatprep.subr.mxu0 0.0
        %940 = vmatpush1.msra.mxu0 %v455
        %941 = vmatprep.subr.mxu0 0.0
        %942 = vmatpush1.msra.mxu0 %v458
        %943 = vmatprep.subr.mxu0 0.0
        %944 = vmatpush1.msra.mxu0 %v461
        %945 = vmatprep.subr.mxu0 0.0
        %946 = vmatpush1.msra.mxu0 %v464
        %947 = vmatprep.subr.mxu0 0.0
        %948 = vmatpush1.msra.mxu0 %v467
        %949 = vmatprep.subr.mxu0 0.0
        %950 = vmatpush1.msra.mxu0 %v470
        %951 = vmatprep.subr.mxu0 0.0
        %952 = vmatpush1.msra.mxu0 %v473
        %953 = vmatprep.subr.mxu0 0.0
        %954 = vmatpush1.msra.mxu0 %v476
        %955 = vmatprep.subr.mxu0 0.0
        %956 = vmatpush1.msra.mxu0 %v479
        %957 = vmatprep.subr.mxu0 0.0
        %958 = vmatpush1.msra.mxu0 %v482
        %959 = vmatprep.subr.mxu0 0.0
        %960 = vmatpush1.msra.mxu0 %v485
        %961 = vmatprep.subr.mxu0 0.0
        %962 = vmatpush1.msra.mxu0 %v488
        %963 = vmatprep.subr.mxu0 0.0
        %964 = vmatpush1.msra.mxu0 %v491
        %965 = vmatprep.subr.mxu0 0.0
        %966 = vmatpush1.msra.mxu0 %v494
        %967 = vmatprep.subr.mxu0 0.0
        %968 = vmatpush1.msra.mxu0 %v497
        %969 = vmatprep.subr.mxu0 0.0
        %970 = vmatpush1.msra.mxu0 %v500
        %971 = vmatprep.subr.mxu0 0.0
        %972 = vmatpush1.msra.mxu0 %v503
        %973 = vmatprep.subr.mxu0 0.0
        %974 = vmatpush1.msra.mxu0 %v506
        %975 = vmatprep.subr.mxu0 0.0
        %976 = vmatpush1.msra.mxu0 %v509
        %977 = vmatprep.subr.mxu0 0.0
        %978 = vmatpush1.msra.mxu0 %v512
        %979 = vmatprep.subr.mxu0 0.0
        %980 = vmatpush1.msra.mxu0 %v515
        %981 = vmatprep.subr.mxu0 0.0
        %982 = vmatpush1.msra.mxu0 %v518
        %983 = vmatprep.subr.mxu0 0.0
        %984 = vmatpush1.msra.mxu0 %v521
        %985 = vmatprep.subr.mxu0 0.0
        %986 = vmatpush1.msra.mxu0 %v524
        %987 = vmatprep.mubr.f32.mxu0 %v230
        %988 = vmatmul.mubr.f32.gmra.mrb[0].mxu0 %v229
        %v989 = vpop.f32.mrb[0].mxu0
        %v990 = vadd.f32 %v915, %v989
        %v991 = vpop.f32.mrb[0].mxu0
        %992 = vmatprep.mubr.f32.mxu0 %v236
        %993 = vmatmul.mubr.f32.gmra.mrb[0].mxu0 %v235
        %v994 = vpop.f32.mrb[0].mxu0
        %v995 = vadd.f32 %v920, %v994
        %v996 = vpop.f32.mrb[0].mxu0
        %997 = vdwg.mxu0
        %998 = vst [vmem:[%s217] sm:$0xff] %v763
        %999 = vst [vmem:[%s217 + $0x8] sm:$0xff] %v765
        %1000 = vst [vmem:[%s217 + $0x10] sm:$0xff] %v990
        %1001 = vst [vmem:[%s217 + $0x18] sm:$0xff] %v769
        %1002 = vst [vmem:[%s217 + $0x20] sm:$0xff] %v771
        %1003 = vst [vmem:[%s217 + $0x28] sm:$0xff] %v995
        %s1004 = sand.u32 %s102, 1
        %s1005 = scalar_lea.sflag [#allocation4], %s1004
        %s1006 = sand.u32 %s102, 1
        %s1007 = smul.addr %s1006, 48
        %s1008 = scalar_lea.vmem [#allocation7], %s1007
        // Predicated region
        $region41: #{test_module_forward.1} parent=31 // pred_check
          %p1009 = pneg %p112
        $region42: #{test_module_forward.1} parent=31 // pred_check_branch
          %1011 = sbr.rel (%p1009) target = $region44
        $region43: #{test_module_forward.1} parent=31 // pred_region
          %s1012 = smul.u32 3, %s21
          %s1014 = ssub.s32 768, 768
          %1015 = vsyncadd %s1005, %s1014
          %s1016 = smul.addr %s1012, 128
          %s1017 = scalar_lea.hbm %s3, %s1016
          %s1018 = sshll.u32 %s1008, 4
          %s1019 = int_to_ptr.vmem [resolvable:$true] %s1018
          %1024 = dma.vmem_to_hbm [thread:$0]  %s1019, 768, %s1017, %s1005, 384, 768, 24
        $region44: #{test_module_forward.1} parent=31 // pred_fallthru
          _
      $region32: #{test_module_forward.1} parent=5 // pred_fallthru
        _
      %p1025 = scmp.le.s32.totalorder 2, %s16
      // Predicated region
      $region45: #{test_module_forward.1} parent=5 // pred_check
        %p1026 = pneg %p1025
      $region46: #{test_module_forward.1} parent=5 // pred_check_branch
        %1028 = sbr.rel (%p1026) target = $region48
      $region47: #{test_module_forward.1} parent=5 // pred_region
        %s1029 = ssub.s32 %s16, 2
        // Predicated region
        $region49: #{test_module_forward.1} parent=47 // pred_check
          %p1030 = pneg %p118
        $region50: #{test_module_forward.1} parent=47 // pred_check_branch
          %1032 = sbr.rel (%p1030) target = $region52
        $region51: #{test_module_forward.1} parent=47 // pred_region
          %s1033 = sand.u32 %s103, 1
          %s1034 = scalar_lea.sflag [#allocation4], %s1033
          %s1035 = sand.u32 %s103, 1
          %s1036 = smul.addr %s1035, 48
          %s1037 = scalar_lea.vmem [#allocation7], %s1036
          %1038 = dma.done %s1034, 768
        $region52: #{test_module_forward.1} parent=47 // pred_fallthru
          _
      $region48: #{test_module_forward.1} parent=5 // pred_fallthru
        _
    $region6: #{test_module_forward.1} parent=1 // loop_footer
      %s20 = sadd.s32 1, %s16
    $region7: #{test_module_forward.1} parent=1 // loop_footer_branch
      %15 = sbr.rel target = $region3
    $region8: #{test_module_forward.1} parent=1 // loop_exit
      _
    %1039 = vsyncpa [#allocation3], 1
    %s1040 = scalar_lea.sflag [#allocation3], 1
    %1041 = vsyncpa %s1040, 1
    %1042 = vsyncpa [#allocation6], 1
    %s1043 = scalar_lea.sflag [#allocation6], 1
    %1044 = vsyncpa %s1043, 1
    %1045 = vsyncpa [#allocation4], 1
    %s1046 = scalar_lea.sflag [#allocation4], 1
    %1047 = vsyncpa %s1046, 1

</llo_original>
